<compile_context>
chip_gen: v7x
topology: tpu7x:2x2x1
jax: 0.10.0
libtpu: 0.0.40
codegen_flags: <defaults>
</compile_context>

<pallas_src>
import functools

import jax
import jax.numpy as jnp
from jax.experimental import pallas as pl
from jax.experimental.pallas import tpu as pltpu

_LANE = 128


def _round_up(n, m):
    return (n + m - 1) // m * m


def _ffn_kernel(x_ref, w1_ref, b1_ref, w2_ref, b2_ref, gamma_ref, beta_ref,
                o_ref, *, eps: float, d_real: int):
    # x_ref: (TM, Dp); w1: (Dp, Hp); b1: (1, Hp); w2: (Hp, Dp); b2: (1, Dp)
    x = x_ref[...]                      # native dtype -> native MXU path for bf16
    w1 = w1_ref[...]
    w2 = w2_ref[...]

    # fc1 + ReLU  (MXU matmul, f32 accumulate)
    h = jnp.dot(x, w1, preferred_element_type=jnp.float32)
    h = h + b1_ref[...].astype(jnp.float32)            # (TM,Hp) + (1,Hp)
    h = jnp.maximum(h, 0.0)

    # fc2 (feed the MXU at the weight dtype; accumulate in f32)
    y = jnp.dot(h.astype(w2.dtype), w2, preferred_element_type=jnp.float32)
    y = y + b2_ref[...].astype(jnp.float32)

    # dropout == identity (eval mode); residual connection
    y = y + x.astype(jnp.float32)

    # LayerNorm over the real (unpadded) feature width.
    # Padded lanes of y are exactly 0 (zero-padded x / weights / biases), so a
    # full-lane sum equals the real-lane sum; divide by d_real.
    inv_d = 1.0 / float(d_real)
    mean = jnp.sum(y, axis=-1, keepdims=True) * inv_d
    if d_real == y.shape[-1]:
        centered = y - mean
    else:
        col = jax.lax.broadcasted_iota(jnp.int32, y.shape, 1)
        centered = jnp.where(col < d_real, y - mean, 0.0)
    var = jnp.sum(centered * centered, axis=-1, keepdims=True) * inv_d
    inv = jax.lax.rsqrt(var + eps)
    out = (centered * inv) * gamma_ref[...].astype(jnp.float32) \
          + beta_ref[...].astype(jnp.float32)

    o_ref[...] = out.astype(o_ref.dtype)


def position_wise_feed_forward(x, w1, b1, w2, b2, gamma, beta,
                               *, eps=1e-5, row_tile=512,
                               vmem_budget_bytes=40 * 2**20):
    """x: [B, S, D] -> [B, S, D].  w1: [D, H], w2: [H, D]."""
    B, S, D = x.shape
    H = w1.shape[1]
    rows = B * S

    # Lane-dense feature / hidden widths.
    Dp = _round_up(D, _LANE)
    Hp = _round_up(H, _LANE)

    x_bytes = jnp.dtype(x.dtype).itemsize
    w_bytes = jnp.dtype(w1.dtype).itemsize
    sub = {4: 8, 2: 16, 1: 32}.get(x_bytes, 8)   # min sublane granule per dtype

    # Row tile: large multiple of the sublane granule, shrunk for tiny inputs
    # and clamped so double-buffered activations + resident weights fit VMEM.
    row_tile = max(sub, (int(row_tile) // sub) * sub)
    row_tile = min(row_tile, _round_up(rows, sub))

    def _vmem_need(rt):
        acts = 2 * rt * Dp * x_bytes * 2                      # x + out, 2 bufs each
        wts = 2 * (2 * Dp * Hp + Hp + 3 * Dp) * w_bytes       # weights/bias/gamma/beta
        interm = rt * Hp * 4 + 2 * rt * Dp * 4                # f32 h, y inside kernel
        return acts + wts + interm

    while row_tile > sub and _vmem_need(row_tile) > vmem_budget_bytes:
        row_tile = max(sub, (row_tile // 2 // sub) * sub)

    rows_p = _round_up(rows, row_tile)
    grid = (rows_p // row_tile,)

    # Zero-pad everything (padded lanes stay exactly zero through the FFN).
    x2 = jnp.pad(x.reshape(rows, D), ((0, rows_p - rows), (0, Dp - D)))
    w1p = jnp.pad(w1, ((0, Dp - D), (0, Hp - H)))
    b1p = jnp.pad(b1, (0, Hp - H)).reshape(1, Hp)
    w2p = jnp.pad(w2, ((0, Hp - H), (0, Dp - D)))
    b2p = jnp.pad(b2, (0, Dp - D)).reshape(1, Dp)
    gp = jnp.pad(gamma, (0, Dp - D)).reshape(1, Dp)
    bp = jnp.pad(beta, (0, Dp - D)).reshape(1, Dp)

    need = _vmem_need(row_tile)
    # Only override the scoped-VMEM default when we would exceed the smallest
    # per-chip default (16 MiB on v5e); cap below v7x's 64 MiB physical VMEM.
    vmem_limit = (int(min(max(int(need * 1.2), 32 * 2**20), 48 * 2**20))
                  if need > 12 * 2**20 else None)

    cost = pl.CostEstimate(
        flops=4 * rows * D * H + 8 * rows * D,
        transcendentals=rows,
        bytes_accessed=rows * D * 2 * x_bytes + 2 * D * H * w_bytes,
    )

    out2 = pl.pallas_call(
        functools.partial(_ffn_kernel, eps=eps, d_real=D),
        out_shape=jax.ShapeDtypeStruct((rows_p, Dp), x.dtype),
        grid_spec=pltpu.PrefetchScalarGridSpec(
            num_scalar_prefetch=0,
            grid=grid,
            in_specs=[
                pl.BlockSpec((row_tile, Dp), lambda i: (i, 0)),   # x tile
                pl.BlockSpec((Dp, Hp), lambda i: (0, 0)),         # W1 (resident)
                pl.BlockSpec((1, Hp), lambda i: (0, 0)),          # b1
                pl.BlockSpec((Hp, Dp), lambda i: (0, 0)),         # W2 (resident)
                pl.BlockSpec((1, Dp), lambda i: (0, 0)),          # b2
                pl.BlockSpec((1, Dp), lambda i: (0, 0)),          # gamma
                pl.BlockSpec((1, Dp), lambda i: (0, 0)),          # beta
            ],
            out_specs=pl.BlockSpec((row_tile, Dp), lambda i: (i, 0)),
        ),
        compiler_params=pltpu.CompilerParams(
            dimension_semantics=("parallel",),
            vmem_limit_bytes=vmem_limit),
        cost_estimate=cost,
    )(x2, w1p, b1p, w2p, b2p, gp, bp)

    return out2[:rows, :D].reshape(B, S, D)


def _reference(x, w1, b1, w2, b2, gamma, beta, eps=1e-5):
    xf = x.astype(jnp.float32)
    h = jnp.maximum(xf @ w1 + b1, 0.0)
    y = h @ w2 + b2
    y = y + xf
    mean = jnp.mean(y, axis=-1, keepdims=True)
    var = jnp.mean((y - mean) ** 2, axis=-1, keepdims=True)
    return ((y - mean) * jax.lax.rsqrt(var + eps)) * gamma + beta


if __name__ == "__main__":
    # Shapes consistent with the module's globals: dim_model=35, hidden=256.
    # (Non-multiple-of-128 D exercises the lane-padding + masked-LayerNorm path.)
    batch, seq, dim_model, hidden = 2, 8, 35, 256

    key = jax.random.PRNGKey(0)
    kx, kw1, kb1, kw2, kb2, kg, kb = jax.random.split(key, 7)

    x = jax.random.normal(kx, (batch, seq, dim_model), dtype=jnp.float32)

    # Deterministic parameter init (mimicking nn.Linear uniform bounds).
    lim1 = 1.0 / (dim_model ** 0.5)
    lim2 = 1.0 / (hidden ** 0.5)
    w1 = jax.random.uniform(kw1, (dim_model, hidden), jnp.float32, -lim1, lim1)
    b1 = jax.random.uniform(kb1, (hidden,), jnp.float32, -lim1, lim1)
    w2 = jax.random.uniform(kw2, (hidden, dim_model), jnp.float32, -lim2, lim2)
    b2 = jax.random.uniform(kb2, (dim_model,), jnp.float32, -lim2, lim2)
    # Non-trivial affine params to exercise the gamma/beta path.
    gamma = 1.0 + 0.1 * jax.random.normal(kg, (dim_model,), jnp.float32)
    beta = 0.1 * jax.random.normal(kb, (dim_model,), jnp.float32)

    out = position_wise_feed_forward(x, w1, b1, w2, b2, gamma, beta)
    out = jax.block_until_ready(out)

    ref = _reference(x, w1, b1, w2, b2, gamma, beta)
    assert out.shape == x.shape
    assert jnp.allclose(out, ref, atol=1e-4, rtol=1e-4), "mismatch vs reference"

    print("KERNEL_OK")
</pallas_src>

<mosaic_0001>
module attributes {stable_mosaic.version = 11 : i64} {
  func.func @_ffn_kernel(%arg0: i32, %arg1: memref<16x128xf32, #tpu.memory_space<vmem>>, %arg2: memref<128x256xf32, #tpu.memory_space<vmem>>, %arg3: memref<1x256xf32, #tpu.memory_space<vmem>>, %arg4: memref<256x128xf32, #tpu.memory_space<vmem>>, %arg5: memref<1x128xf32, #tpu.memory_space<vmem>>, %arg6: memref<1x128xf32, #tpu.memory_space<vmem>>, %arg7: memref<1x128xf32, #tpu.memory_space<vmem>>, %arg8: memref<16x128xf32, #tpu.memory_space<vmem>>) attributes {dimension_semantics = [#tpu.dimension_semantics<parallel>], iteration_bounds = array<i64: 1>, scalar_prefetch = 0 : i64, scratch_operands = 0 : i64, tpu.core_type = #tpu.core_type<tc>, window_params = [{transform_indices = @transform_0, window_bounds = array<i64: 16, 128>}, {pipeline_mode = #tpu.pipeline_mode<synchronous>, transform_indices = @transform_1, window_bounds = array<i64: 128, 256>}, {pipeline_mode = #tpu.pipeline_mode<synchronous>, transform_indices = @transform_2, window_bounds = array<i64: 1, 256>}, {pipeline_mode = #tpu.pipeline_mode<synchronous>, transform_indices = @transform_3, window_bounds = array<i64: 256, 128>}, {pipeline_mode = #tpu.pipeline_mode<synchronous>, transform_indices = @transform_4, window_bounds = array<i64: 1, 128>}, {pipeline_mode = #tpu.pipeline_mode<synchronous>, transform_indices = @transform_5, window_bounds = array<i64: 1, 128>}, {pipeline_mode = #tpu.pipeline_mode<synchronous>, transform_indices = @transform_6, window_bounds = array<i64: 1, 128>}, {transform_indices = @transform_7, window_bounds = array<i64: 16, 128>}]} {
    %c0 = arith.constant 0 : index
    %c0_0 = arith.constant 0 : index
    %0 = vector.load %arg1[%c0, %c0_0] : memref<16x128xf32, #tpu.memory_space<vmem>>, vector<16x128xf32>
    %c0_1 = arith.constant 0 : index
    %c0_2 = arith.constant 0 : index
    %1 = vector.load %arg2[%c0_1, %c0_2] : memref<128x256xf32, #tpu.memory_space<vmem>>, vector<128x256xf32>
    %c0_3 = arith.constant 0 : index
    %c0_4 = arith.constant 0 : index
    %2 = vector.load %arg4[%c0_3, %c0_4] : memref<256x128xf32, #tpu.memory_space<vmem>>, vector<256x128xf32>
    %cst = arith.constant dense<0.000000e+00> : vector<16x256xf32>
    %3 = tpu.matmul %0, %1, %cst {dimension_numbers = #tpu.dot_dimension_numbers<[1], [0], [0], [1], [0, 0, 1, 1], [], []>} : vector<16x128xf32>, vector<128x256xf32>, vector<16x256xf32> -> vector<16x256xf32>
    %c0_5 = arith.constant 0 : index
    %c0_6 = arith.constant 0 : index
    %4 = vector.load %arg3[%c0_5, %c0_6] : memref<1x256xf32, #tpu.memory_space<vmem>>, vector<1x256xf32>
    %5 = vector.broadcast %4 : vector<1x256xf32> to vector<16x256xf32>
    %6 = arith.addf %3, %5 : vector<16x256xf32>
    %cst_7 = arith.constant 0.000000e+00 : f32
    %7 = vector.broadcast %cst_7 : f32 to vector<16x256xf32>
    %8 = arith.maximumf %6, %7 : vector<16x256xf32>
    %cst_8 = arith.constant dense<0.000000e+00> : vector<16x128xf32>
    %9 = tpu.matmul %8, %2, %cst_8 {dimension_numbers = #tpu.dot_dimension_numbers<[1], [0], [0], [1], [0, 0, 1, 1], [], []>} : vector<16x256xf32>, vector<256x128xf32>, vector<16x128xf32> -> vector<16x128xf32>
    %c0_9 = arith.constant 0 : index
    %c0_10 = arith.constant 0 : index
    %10 = vector.load %arg5[%c0_9, %c0_10] : memref<1x128xf32, #tpu.memory_space<vmem>>, vector<1x128xf32>
    %11 = vector.broadcast %10 : vector<1x128xf32> to vector<16x128xf32>
    %12 = arith.addf %9, %11 : vector<16x128xf32>
    %13 = arith.addf %12, %0 : vector<16x128xf32>
    %cst_11 = arith.constant dense<0.000000e+00> : vector<16xf32>
    %14 = vector.multi_reduction <add>, %13, %cst_11 [1] : vector<16x128xf32> to vector<16xf32>
    %15 = vector.shape_cast %14 : vector<16xf32> to vector<16x1xf32>
    %cst_12 = arith.constant 0.0285714287 : f32
    %16 = vector.broadcast %cst_12 : f32 to vector<16x1xf32>
    %17 = arith.mulf %15, %16 : vector<16x1xf32>
    %18 = tpu.iota {dimensions = array<i32: 1>} : vector<16x128xi32>
    %c35_i32 = arith.constant 35 : i32
    %19 = vector.broadcast %c35_i32 : i32 to vector<16x128xi32>
    %20 = arith.cmpi slt, %18, %19 : vector<16x128xi32>
    %21 = vector.broadcast %17 : vector<16x1xf32> to vector<16x128xf32>
    %22 = arith.subf %13, %21 : vector<16x128xf32>
    %cst_13 = arith.constant 0.000000e+00 : f32
    %23 = vector.broadcast %cst_13 : f32 to vector<16x128xf32>
    %24 = arith.select %20, %22, %23 : vector<16x128xi1>, vector<16x128xf32>
    %25 = arith.mulf %24, %24 : vector<16x128xf32>
    %cst_14 = arith.constant dense<0.000000e+00> : vector<16xf32>
    %26 = vector.multi_reduction <add>, %25, %cst_14 [1] : vector<16x128xf32> to vector<16xf32>
    %27 = vector.shape_cast %26 : vector<16xf32> to vector<16x1xf32>
    %cst_15 = arith.constant 0.0285714287 : f32
    %28 = vector.broadcast %cst_15 : f32 to vector<16x1xf32>
    %29 = arith.mulf %27, %28 : vector<16x1xf32>
    %cst_16 = arith.constant 9.99999974E-6 : f32
    %30 = vector.broadcast %cst_16 : f32 to vector<16x1xf32>
    %31 = arith.addf %29, %30 : vector<16x1xf32>
    %32 = math.rsqrt %31 : vector<16x1xf32>
    %33 = vector.broadcast %32 : vector<16x1xf32> to vector<16x128xf32>
    %34 = arith.mulf %24, %33 : vector<16x128xf32>
    %c0_17 = arith.constant 0 : index
    %c0_18 = arith.constant 0 : index
    %35 = vector.load %arg6[%c0_17, %c0_18] : memref<1x128xf32, #tpu.memory_space<vmem>>, vector<1x128xf32>
    %36 = vector.broadcast %35 : vector<1x128xf32> to vector<16x128xf32>
    %37 = arith.mulf %34, %36 : vector<16x128xf32>
    %c0_19 = arith.constant 0 : index
    %c0_20 = arith.constant 0 : index
    %38 = vector.load %arg7[%c0_19, %c0_20] : memref<1x128xf32, #tpu.memory_space<vmem>>, vector<1x128xf32>
    %39 = vector.broadcast %38 : vector<1x128xf32> to vector<16x128xf32>
    %40 = arith.addf %37, %39 : vector<16x128xf32>
    %c0_21 = arith.constant 0 : index
    %c0_22 = arith.constant 0 : index
    %41 = vector.load %arg8[%c0_21, %c0_22] : memref<16x128xf32, #tpu.memory_space<vmem>>, vector<16x128xf32>
    tpu.vector_store %arg8[%c0_21, %c0_22], %40 {strides = array<i32>} : memref<16x128xf32, #tpu.memory_space<vmem>>, vector<16x128xf32>,
    return
  }
  func.func @transform_0(%arg0: i32) -> (i32, i32) {
    %c0_i32 = arith.constant 0 : i32
    %c0_i32_0 = arith.constant 0 : i32
    return %arg0, %c0_i32 : i32, i32
  }
  func.func @transform_1(%arg0: i32) -> (i32, i32) {
    %c0_i32 = arith.constant 0 : i32
    %c0_i32_0 = arith.constant 0 : i32
    %c0_i32_1 = arith.constant 0 : i32
    return %c0_i32, %c0_i32_0 : i32, i32
  }
  func.func @transform_2(%arg0: i32) -> (i32, i32) {
    %c0_i32 = arith.constant 0 : i32
    %c0_i32_0 = arith.constant 0 : i32
    %c0_i32_1 = arith.constant 0 : i32
    return %c0_i32, %c0_i32_0 : i32, i32
  }
  func.func @transform_3(%arg0: i32) -> (i32, i32) {
    %c0_i32 = arith.constant 0 : i32
    %c0_i32_0 = arith.constant 0 : i32
    %c0_i32_1 = arith.constant 0 : i32
    return %c0_i32, %c0_i32_0 : i32, i32
  }
  func.func @transform_4(%arg0: i32) -> (i32, i32) {
    %c0_i32 = arith.constant 0 : i32
    %c0_i32_0 = arith.constant 0 : i32
    %c0_i32_1 = arith.constant 0 : i32
    return %c0_i32, %c0_i32_0 : i32, i32
  }
  func.func @transform_5(%arg0: i32) -> (i32, i32) {
    %c0_i32 = arith.constant 0 : i32
    %c0_i32_0 = arith.constant 0 : i32
    %c0_i32_1 = arith.constant 0 : i32
    return %c0_i32, %c0_i32_0 : i32, i32
  }
  func.func @transform_6(%arg0: i32) -> (i32, i32) {
    %c0_i32 = arith.constant 0 : i32
    %c0_i32_0 = arith.constant 0 : i32
    %c0_i32_1 = arith.constant 0 : i32
    return %c0_i32, %c0_i32_0 : i32, i32
  }
  func.func @transform_7(%arg0: i32) -> (i32, i32) {
    %c0_i32 = arith.constant 0 : i32
    %c0_i32_0 = arith.constant 0 : i32
    return %arg0, %c0_i32 : i32, i32
  }
}

</mosaic_0001>

<llo_original>
// kernel: tpu_custom_call.1
$region0: #{tpu_custom_call.1}
  #allocation0 [shape = 'u32[]', space=smem, size = 0x4, offset = 0x4, fixed_abs, tag = 'smem constant byte address 0x4 - core index']
  #allocation1 [shape = 'u32[144,128]{1,0:T(1,128)}', space=vmem, size = 0x12000, scoped, tag = 'internal scratch']
  %s0 = inlined_call_operand.hbm [shape: f32[16,128], index: 0, kind: input, shape index: {}]
  %s1 = inlined_call_operand.hbm [shape: f32[128,256], index: 1, kind: input, shape index: {}]
  %s2 = inlined_call_operand.vmem [shape: f32[1,256], index: 2, kind: input, shape index: {}]
  %s3 = inlined_call_operand.hbm [shape: f32[256,128], index: 3, kind: input, shape index: {}]
  %s4 = inlined_call_operand.vmem [shape: f32[1,128], index: 4, kind: input, shape index: {}]
  %s5 = inlined_call_operand.vmem [shape: f32[1,128], index: 5, kind: input, shape index: {}]
  %s6 = inlined_call_operand.vmem [shape: f32[1,128], index: 6, kind: input, shape index: {}]
  %s7 = inlined_call_operand.hbm [shape: f32[16,128], index: 7, kind: output, shape index: {}]
  %s8 = sld [smem:[#allocation0]]
  $region50: #{tpu_custom_call.1} parent=0
    _
  %s10 = ssub.s32 1, %s8
  %s11 = scalar_select 0, %s10, %s8
  $region1: #{tpu_custom_call.1} parent=0
    #allocation2 [shape = 'u8[8192]{0}', space=vmem, size = 0x2000, scoped, tag = 'input window, operand 0, single buffered']
    #allocation3 [shape = 's32[1]{0}', space=sflag, size = 0x4, scoped, tag = 'scoped memory for tpu_custom_call.1']
    #allocation4 [shape = 's32[1]{0}', space=sflag, size = 0x4, scoped, tag = 'scoped memory for tpu_custom_call.1']
    #allocation5 [shape = 'u8[131072]{0}', space=vmem, size = 0x20000, scoped, tag = 'input window, operand 1, single buffered']
    #allocation6 [shape = 's32[1]{0}', space=sflag, size = 0x4, scoped, tag = 'scoped memory for tpu_custom_call.1']
    #allocation7 [shape = 'u8[131072]{0}', space=vmem, size = 0x20000, scoped, tag = 'input window, operand 3, single buffered']
    #allocation8 [shape = 'u8[8192]{0}', space=vmem, size = 0x2000, scoped, tag = 'output window, operand 0, single buffered']
    %12 = vsyncpa [#allocation3], 0
    %13 = vsyncpa [#allocation6], 0
    %14 = vsyncpa [#allocation4], 0
    // Predicated region
    $region2: #{tpu_custom_call.1} parent=1 // pred_check
      _
    $region3: #{tpu_custom_call.1} parent=1 // pred_check_branch
      %16 = sbr.rel (0) target = $region5
    $region4: #{tpu_custom_call.1} parent=1 // pred_region
      %s18 = ssub.s32 256, 256
      %19 = vsyncadd [#allocation3], %s18
      %s20 = sshll.u32 [#allocation2], 4
      %s21 = int_to_ptr.vmem [resolvable:$true] %s20
      %26 = dma.hbm_to_vmem [thread:$0]  %s0, 256, %s21, [#allocation3], 128, 128, 8
    $region5: #{tpu_custom_call.1} parent=1 // pred_fallthru
      _
    // Predicated region
    $region6: #{tpu_custom_call.1} parent=1 // pred_check
      _
    $region7: #{tpu_custom_call.1} parent=1 // pred_check_branch
      %28 = sbr.rel (0) target = $region9
    $region8: #{tpu_custom_call.1} parent=1 // pred_region
      %s30 = ssub.s32 4096, 4096
      %31 = vsyncadd [#allocation6], %s30
      %s32 = sshll.u32 [#allocation5], 4
      %s33 = int_to_ptr.vmem [resolvable:$true] %s32
      %38 = dma.hbm_to_vmem [thread:$0]  %s1, 4096, %s33, [#allocation6], 256, 256, 16
    $region9: #{tpu_custom_call.1} parent=1 // pred_fallthru
      _
    // Predicated region
    $region10: #{tpu_custom_call.1} parent=1 // pred_check
      _
    $region11: #{tpu_custom_call.1} parent=1 // pred_check_branch
      %40 = sbr.rel (0) target = $region13
    $region12: #{tpu_custom_call.1} parent=1 // pred_region
      _
    $region13: #{tpu_custom_call.1} parent=1 // pred_fallthru
      _
    // Predicated region
    $region14: #{tpu_custom_call.1} parent=1 // pred_check
      _
    $region15: #{tpu_custom_call.1} parent=1 // pred_check_branch
      %42 = sbr.rel (0) target = $region17
    $region16: #{tpu_custom_call.1} parent=1 // pred_region
      %s44 = ssub.s32 4096, 4096
      %45 = vsyncadd [#allocation6], %s44
      %s46 = sshll.u32 [#allocation7], 4
      %s47 = int_to_ptr.vmem [resolvable:$true] %s46
      %52 = dma.hbm_to_vmem [thread:$0]  %s3, 4096, %s47, [#allocation6], 128, 128, 8
    $region17: #{tpu_custom_call.1} parent=1 // pred_fallthru
      _
    // Predicated region
    $region18: #{tpu_custom_call.1} parent=1 // pred_check
      _
    $region19: #{tpu_custom_call.1} parent=1 // pred_check_branch
      %54 = sbr.rel (0) target = $region21
    $region20: #{tpu_custom_call.1} parent=1 // pred_region
      _
    $region21: #{tpu_custom_call.1} parent=1 // pred_fallthru
      _
    // Predicated region
    $region22: #{tpu_custom_call.1} parent=1 // pred_check
      _
    $region23: #{tpu_custom_call.1} parent=1 // pred_check_branch
      %56 = sbr.rel (0) target = $region25
    $region24: #{tpu_custom_call.1} parent=1 // pred_region
      _
    $region25: #{tpu_custom_call.1} parent=1 // pred_fallthru
      _
    // Predicated region
    $region26: #{tpu_custom_call.1} parent=1 // pred_check
      _
    $region27: #{tpu_custom_call.1} parent=1 // pred_check_branch
      %58 = sbr.rel (0) target = $region29
    $region28: #{tpu_custom_call.1} parent=1 // pred_region
      _
    $region29: #{tpu_custom_call.1} parent=1 // pred_fallthru
      _
    // Predicated region
    $region30: #{tpu_custom_call.1} parent=1 // pred_check
      _
    $region31: #{tpu_custom_call.1} parent=1 // pred_check_branch
      %60 = sbr.rel (0) target = $region33
    $region32: #{tpu_custom_call.1} parent=1 // pred_region
      %61 = dma.done [#allocation3], 256
    $region33: #{tpu_custom_call.1} parent=1 // pred_fallthru
      _
    // Predicated region
    $region34: #{tpu_custom_call.1} parent=1 // pred_check
      _
    $region35: #{tpu_custom_call.1} parent=1 // pred_check_branch
      %63 = sbr.rel (0) target = $region37
    $region36: #{tpu_custom_call.1} parent=1 // pred_region
      %64 = dma.done [#allocation6], 4096
    $region37: #{tpu_custom_call.1} parent=1 // pred_fallthru
      _
    // Predicated region
    $region38: #{tpu_custom_call.1} parent=1 // pred_check
      _
    $region39: #{tpu_custom_call.1} parent=1 // pred_check_branch
      %66 = sbr.rel (0) target = $region41
    $region40: #{tpu_custom_call.1} parent=1 // pred_region
      %67 = dma.done [#allocation6], 4096
    $region41: #{tpu_custom_call.1} parent=1 // pred_fallthru
      _
    %v68 = vld [vmem:[#allocation2] sm:$0xff]
    %v69 = vld [vmem:[#allocation2 + $0x8] sm:$0xff]
    %v70 = vld [vmem:[#allocation5] sm:$0xff]
    %v71 = vld [vmem:[#allocation5 + $0x8] sm:$0xff]
    %v72 = vld [vmem:[#allocation5 + $0x10] sm:$0xff]
    %v73 = vld [vmem:[#allocation5 + $0x18] sm:$0xff]
    %v74 = vld [vmem:[#allocation5 + $0x20] sm:$0xff]
    %v75 = vld [vmem:[#allocation5 + $0x28] sm:$0xff]
    %v76 = vld [vmem:[#allocation5 + $0x30] sm:$0xff]
    %v77 = vld [vmem:[#allocation5 + $0x38] sm:$0xff]
    %v78 = vld [vmem:[#allocation5 + $0x40] sm:$0xff]
    %v79 = vld [vmem:[#allocation5 + $0x48] sm:$0xff]
    %v80 = vld [vmem:[#allocation5 + $0x50] sm:$0xff]
    %v81 = vld [vmem:[#allocation5 + $0x58] sm:$0xff]
    %v82 = vld [vmem:[#allocation5 + $0x60] sm:$0xff]
    %v83 = vld [vmem:[#allocation5 + $0x68] sm:$0xff]
    %v84 = vld [vmem:[#allocation5 + $0x70] sm:$0xff]
    %v85 = vld [vmem:[#allocation5 + $0x78] sm:$0xff]
    %v86 = vld [vmem:[#allocation5 + $0x80] sm:$0xff]
    %v87 = vld [vmem:[#allocation5 + $0x88] sm:$0xff]
    %v88 = vld [vmem:[#allocation5 + $0x90] sm:$0xff]
    %v89 = vld [vmem:[#allocation5 + $0x98] sm:$0xff]
    %v90 = vld [vmem:[#allocation5 + $0xa0] sm:$0xff]
    %v91 = vld [vmem:[#allocation5 + $0xa8] sm:$0xff]
    %v92 = vld [vmem:[#allocation5 + $0xb0] sm:$0xff]
    %v93 = vld [vmem:[#allocation5 + $0xb8] sm:$0xff]
    %v94 = vld [vmem:[#allocation5 + $0xc0] sm:$0xff]
    %v95 = vld [vmem:[#allocation5 + $0xc8] sm:$0xff]
    %v96 = vld [vmem:[#allocation5 + $0xd0] sm:$0xff]
    %v97 = vld [vmem:[#allocation5 + $0xd8] sm:$0xff]
    %v98 = vld [vmem:[#allocation5 + $0xe0] sm:$0xff]
    %v99 = vld [vmem:[#allocation5 + $0xe8] sm:$0xff]
    %v100 = vld [vmem:[#allocation5 + $0xf0] sm:$0xff]
    %v101 = vld [vmem:[#allocation5 + $0xf8] sm:$0xff]
    %v102 = vld [vmem:[#allocation7] sm:$0xff]
    %v103 = vld [vmem:[#allocation7 + $0x8] sm:$0xff]
    %v104 = vld [vmem:[#allocation7 + $0x10] sm:$0xff]
    %v105 = vld [vmem:[#allocation7 + $0x18] sm:$0xff]
    %v106 = vld [vmem:[#allocation7 + $0x20] sm:$0xff]
    %v107 = vld [vmem:[#allocation7 + $0x28] sm:$0xff]
    %v108 = vld [vmem:[#allocation7 + $0x30] sm:$0xff]
    %v109 = vld [vmem:[#allocation7 + $0x38] sm:$0xff]
    %v110 = vld [vmem:[#allocation7 + $0x40] sm:$0xff]
    %v111 = vld [vmem:[#allocation7 + $0x48] sm:$0xff]
    %v112 = vld [vmem:[#allocation7 + $0x50] sm:$0xff]
    %v113 = vld [vmem:[#allocation7 + $0x58] sm:$0xff]
    %v114 = vld [vmem:[#allocation7 + $0x60] sm:$0xff]
    %v115 = vld [vmem:[#allocation7 + $0x68] sm:$0xff]
    %v116 = vld [vmem:[#allocation7 + $0x70] sm:$0xff]
    %v117 = vld [vmem:[#allocation7 + $0x78] sm:$0xff]
    %v118 = vld [vmem:[#allocation7 + $0x80] sm:$0xff]
    %v119 = vld [vmem:[#allocation7 + $0x88] sm:$0xff]
    %v120 = vld [vmem:[#allocation7 + $0x90] sm:$0xff]
    %v121 = vld [vmem:[#allocation7 + $0x98] sm:$0xff]
    %v122 = vld [vmem:[#allocation7 + $0xa0] sm:$0xff]
    %v123 = vld [vmem:[#allocation7 + $0xa8] sm:$0xff]
    %v124 = vld [vmem:[#allocation7 + $0xb0] sm:$0xff]
    %v125 = vld [vmem:[#allocation7 + $0xb8] sm:$0xff]
    %v126 = vld [vmem:[#allocation7 + $0xc0] sm:$0xff]
    %v127 = vld [vmem:[#allocation7 + $0xc8] sm:$0xff]
    %v128 = vld [vmem:[#allocation7 + $0xd0] sm:$0xff]
    %v129 = vld [vmem:[#allocation7 + $0xd8] sm:$0xff]
    %v130 = vld [vmem:[#allocation7 + $0xe0] sm:$0xff]
    %v131 = vld [vmem:[#allocation7 + $0xe8] sm:$0xff]
    %v132 = vld [vmem:[#allocation7 + $0xf0] sm:$0xff]
    %v133 = vld [vmem:[#allocation7 + $0xf8] sm:$0xff]
    %v134 = vld [vmem:[%s2] sm:$0x3]
    %v136 = vlaneseq
    %v137 = vshrl.u32 %v136, 7
    %v138 = vsub.s32 0, %v137
    %v139 = vrot.slane %v134, %v138
    %v140 = vlaneseq
    %v141 = vshrl.u32 %v140, 7
    %v142 = vsub.s32 1, %v141
    %v143 = vrot.slane %v134, %v142
    %146 = vmatprep.subr.mxu0 %v71
    %147 = vmatpush1.msra.mxu0 %v70
    %148 = vmatprep.subr.mxu0 %v73
    %149 = vmatpush1.msra.mxu0 %v72
    %150 = vmatprep.subr.mxu0 %v75
    %151 = vmatpush1.msra.mxu0 %v74
    %152 = vmatprep.subr.mxu0 %v77
    %153 = vmatpush1.msra.mxu0 %v76
    %154 = vmatprep.subr.mxu0 %v79
    %155 = vmatpush1.msra.mxu0 %v78
    %156 = vmatprep.subr.mxu0 %v81
    %157 = vmatpush1.msra.mxu0 %v80
    %158 = vmatprep.subr.mxu0 %v83
    %159 = vmatpush1.msra.mxu0 %v82
    %160 = vmatprep.subr.mxu0 %v85
    %161 = vmatpush1.msra.mxu0 %v84
    %162 = vmatprep.subr.mxu0 %v87
    %163 = vmatpush1.msra.mxu0 %v86
    %164 = vmatprep.subr.mxu0 %v89
    %165 = vmatpush1.msra.mxu0 %v88
    %166 = vmatprep.subr.mxu0 %v91
    %167 = vmatpush1.msra.mxu0 %v90
    %168 = vmatprep.subr.mxu0 %v93
    %169 = vmatpush1.msra.mxu0 %v92
    %170 = vmatprep.subr.mxu0 %v95
    %171 = vmatpush1.msra.mxu0 %v94
    %172 = vmatprep.subr.mxu0 %v97
    %173 = vmatpush1.msra.mxu0 %v96
    %174 = vmatprep.subr.mxu0 %v99
    %175 = vmatpush1.msra.mxu0 %v98
    %176 = vmatprep.subr.mxu0 %v101
    %177 = vmatpush1.msra.mxu0 %v100
    %178 = vmatprep.subr.mxu0 0.0
    %179 = vmatpush1.msra.mxu0 0.0
    %180 = vmatprep.subr.mxu0 0.0
    %181 = vmatpush1.msra.mxu0 0.0
    %182 = vmatprep.subr.mxu0 0.0
    %183 = vmatpush1.msra.mxu0 0.0
    %184 = vmatprep.subr.mxu0 0.0
    %185 = vmatpush1.msra.mxu0 0.0
    %186 = vmatprep.subr.mxu0 0.0
    %187 = vmatpush1.msra.mxu0 0.0
    %188 = vmatprep.subr.mxu0 0.0
    %189 = vmatpush1.msra.mxu0 0.0
    %190 = vmatprep.subr.mxu0 0.0
    %191 = vmatpush1.msra.mxu0 0.0
    %192 = vmatprep.subr.mxu0 0.0
    %193 = vmatpush1.msra.mxu0 0.0
    %194 = vmatprep.subr.mxu0 0.0
    %195 = vmatpush1.msra.mxu0 0.0
    %196 = vmatprep.subr.mxu0 0.0
    %197 = vmatpush1.msra.mxu0 0.0
    %198 = vmatprep.subr.mxu0 0.0
    %199 = vmatpush1.msra.mxu0 0.0
    %200 = vmatprep.subr.mxu0 0.0
    %201 = vmatpush1.msra.mxu0 0.0
    %202 = vmatprep.subr.mxu0 0.0
    %203 = vmatpush1.msra.mxu0 0.0
    %204 = vmatprep.subr.mxu0 0.0
    %205 = vmatpush1.msra.mxu0 0.0
    %206 = vmatprep.subr.mxu0 0.0
    %207 = vmatpush1.msra.mxu0 0.0
    %208 = vmatprep.subr.mxu0 0.0
    %209 = vmatpush1.msra.mxu0 0.0
    %210 = vmatprep.mubr.f32.mxu0 0.0
    %211 = vmatmul.mubr.f32.gmra.mrb[0].mxu0 %v68
    %v212 = vpop.f32.mrb[0].mxu0
    %v213 = vadd.f32 %v139, %v212
    %v214 = vpop.f32.mrb[0].mxu0
    %v215 = vadd.f32 %v143, %v214
    %216 = vmatprep.mubr.f32.mxu0 0.0
    %217 = vmatmul.mubr.f32.gmra.mrb[0].mxu0 %v69
    %v218 = vpop.f32.mrb[0].mxu0
    %v219 = vadd.f32 %v139, %v218
    %v220 = vpop.f32.mrb[0].mxu0
    %v221 = vadd.f32 %v143, %v220
    %222 = vdwg.mxu0
    %v223 = vmax.f32 %v213, 0.0
    %v224 = vmax.f32 %v215, 0.0
    %v225 = vmax.f32 %v219, 0.0
    %v226 = vmax.f32 %v221, 0.0
    %v227 = vld [vmem:[%s4] sm:$0x1]
    %v229 = vlaneseq
    %v230 = vshrl.u32 %v229, 7
    %v231 = vsub.s32 0, %v230
    %v232 = vrot.slane %v227, %v231
    %234 = vmatprep.subr.mxu0 0.0
    %235 = vmatpush1.msra.mxu0 %v102
    %236 = vmatprep.subr.mxu0 0.0
    %237 = vmatpush1.msra.mxu0 %v103
    %238 = vmatprep.subr.mxu0 0.0
    %239 = vmatpush1.msra.mxu0 %v104
    %240 = vmatprep.subr.mxu0 0.0
    %241 = vmatpush1.msra.mxu0 %v105
    %242 = vmatprep.subr.mxu0 0.0
    %243 = vmatpush1.msra.mxu0 %v106
    %244 = vmatprep.subr.mxu0 0.0
    %245 = vmatpush1.msra.mxu0 %v107
    %246 = vmatprep.subr.mxu0 0.0
    %247 = vmatpush1.msra.mxu0 %v108
    %248 = vmatprep.subr.mxu0 0.0
    %249 = vmatpush1.msra.mxu0 %v109
    %250 = vmatprep.subr.mxu0 0.0
    %251 = vmatpush1.msra.mxu0 %v110
    %252 = vmatprep.subr.mxu0 0.0
    %253 = vmatpush1.msra.mxu0 %v111
    %254 = vmatprep.subr.mxu0 0.0
    %255 = vmatpush1.msra.mxu0 %v112
    %256 = vmatprep.subr.mxu0 0.0
    %257 = vmatpush1.msra.mxu0 %v113
    %258 = vmatprep.subr.mxu0 0.0
    %259 = vmatpush1.msra.mxu0 %v114
    %260 = vmatprep.subr.mxu0 0.0
    %261 = vmatpush1.msra.mxu0 %v115
    %262 = vmatprep.subr.mxu0 0.0
    %263 = vmatpush1.msra.mxu0 %v116
    %264 = vmatprep.subr.mxu0 0.0
    %265 = vmatpush1.msra.mxu0 %v117
    %266 = vmatprep.subr.mxu0 0.0
    %267 = vmatpush1.msra.mxu0 %v118
    %268 = vmatprep.subr.mxu0 0.0
    %269 = vmatpush1.msra.mxu0 %v119
    %270 = vmatprep.subr.mxu0 0.0
    %271 = vmatpush1.msra.mxu0 %v120
    %272 = vmatprep.subr.mxu0 0.0
    %273 = vmatpush1.msra.mxu0 %v121
    %274 = vmatprep.subr.mxu0 0.0
    %275 = vmatpush1.msra.mxu0 %v122
    %276 = vmatprep.subr.mxu0 0.0
    %277 = vmatpush1.msra.mxu0 %v123
    %278 = vmatprep.subr.mxu0 0.0
    %279 = vmatpush1.msra.mxu0 %v124
    %280 = vmatprep.subr.mxu0 0.0
    %281 = vmatpush1.msra.mxu0 %v125
    %282 = vmatprep.subr.mxu0 0.0
    %283 = vmatpush1.msra.mxu0 %v126
    %284 = vmatprep.subr.mxu0 0.0
    %285 = vmatpush1.msra.mxu0 %v127
    %286 = vmatprep.subr.mxu0 0.0
    %287 = vmatpush1.msra.mxu0 %v128
    %288 = vmatprep.subr.mxu0 0.0
    %289 = vmatpush1.msra.mxu0 %v129
    %290 = vmatprep.subr.mxu0 0.0
    %291 = vmatpush1.msra.mxu0 %v130
    %292 = vmatprep.subr.mxu0 0.0
    %293 = vmatpush1.msra.mxu0 %v131
    %294 = vmatprep.subr.mxu0 0.0
    %295 = vmatpush1.msra.mxu0 %v132
    %296 = vmatprep.subr.mxu0 0.0
    %297 = vmatpush1.msra.mxu0 %v133
    %298 = vmatprep.mubr.f32.mxu0 %v224
    %299 = vmatmul.mubr.f32.gmra.mrb[0].mxu0 %v223
    %v300 = vpop.f32.mrb[0].mxu0
    %v301 = vadd.f32 %v232, %v300
    %v302 = vpop.f32.mrb[0].mxu0
    %303 = vmatprep.mubr.f32.mxu0 %v226
    %304 = vmatmul.mubr.f32.gmra.mrb[0].mxu0 %v225
    %v305 = vpop.f32.mrb[0].mxu0
    %v306 = vadd.f32 %v232, %v305
    %v307 = vpop.f32.mrb[0].mxu0
    %308 = vdwg.mxu0
    %v309 = vadd.f32 %v301, %v68
    %v310 = vadd.f32 %v306, %v69
    %311 = vadd.xlane.f32.xlu0 %v309
    %v312 = vpop.xlane.xlu0 %311
    %313 = vadd.xlane.f32.xlu0 %v310
    %v314 = vpop.xlane.xlu0 %313
    %v315 = vmul.f32 %v312, 0.028571429
    %v316 = vmul.f32 %v314, 0.028571429
    %v317 = vlaneseq
    %v318 = vand.u32 %v317, 127
    %vm319 = vcmp.lt.s32.totalorder %v318, 35
    %v320 = vsub.f32 %v309, %v315
    %v321 = vsub.f32 %v310, %v316
    %v322 = vsel %vm319, %v320, 0.0
    %v323 = vsel %vm319, %v321, 0.0
    %v324 = vmul.f32 %v322, %v322
    %v325 = vmul.f32 %v323, %v323
    %326 = vadd.xlane.f32.xlu0 %v324
    %v327 = vpop.xlane.xlu0 %326
    %328 = vadd.xlane.f32.xlu0 %v325
    %v329 = vpop.xlane.xlu0 %328
    %v330 = vmul.f32 %v327, 0.028571429
    %v331 = vmul.f32 %v329, 0.028571429
    %v332 = vadd.f32 %v330, 1e-05
    %v333 = vadd.f32 %v331, 1e-05
    %v334 = vrsqrt.pop %v332
    %v335 = vrsqrt.pop %v333
    %v336 = vmul.f32 %v322, %v334
    %v337 = vmul.f32 %v323, %v335
    %v338 = vld [vmem:[%s5] sm:$0x1]
    %v340 = vlaneseq
    %v341 = vshrl.u32 %v340, 7
    %v342 = vsub.s32 0, %v341
    %v343 = vrot.slane %v338, %v342
    %v345 = vmul.f32 %v336, %v343
    %v346 = vmul.f32 %v337, %v343
    %v347 = vld [vmem:[%s6] sm:$0x1]
    %v349 = vlaneseq
    %v350 = vshrl.u32 %v349, 7
    %v351 = vsub.s32 0, %v350
    %v352 = vrot.slane %v347, %v351
    %v354 = vadd.f32 %v345, %v352
    %v355 = vadd.f32 %v346, %v352
    %356 = vst [vmem:[#allocation8] sm:$0xff] %v354
    %357 = vst [vmem:[#allocation8 + $0x8] sm:$0xff] %v355
    // Predicated region
    $region42: #{tpu_custom_call.1} parent=1 // pred_check
      _
    $region43: #{tpu_custom_call.1} parent=1 // pred_check_branch
      %359 = sbr.rel (0) target = $region45
    $region44: #{tpu_custom_call.1} parent=1 // pred_region
      %s361 = ssub.s32 256, 256
      %362 = vsyncadd [#allocation4], %s361
      %s363 = sshll.u32 [#allocation8], 4
      %s364 = int_to_ptr.vmem [resolvable:$true] %s363
      %369 = dma.vmem_to_hbm [thread:$0]  %s364, 256, %s7, [#allocation4], 128, 128, 8
    $region45: #{tpu_custom_call.1} parent=1 // pred_fallthru
      _
    // Predicated region
    $region46: #{tpu_custom_call.1} parent=1 // pred_check
      _
    $region47: #{tpu_custom_call.1} parent=1 // pred_check_branch
      %371 = sbr.rel (0) target = $region49
    $region48: #{tpu_custom_call.1} parent=1 // pred_region
      %372 = dma.done [#allocation4], 256
    $region49: #{tpu_custom_call.1} parent=1 // pred_fallthru
      _
    %373 = vsyncpa [#allocation3], 1
    %374 = vsyncpa [#allocation6], 1
    %375 = vsyncpa [#allocation4], 1

</llo_original>
